<compile_context>
chip_gen: v7x
topology: tpu7x:2x2x1
jax: 0.10.0
libtpu: 0.0.40
codegen_flags: <defaults>
</compile_context>

<pallas_src>
import functools

import jax
import jax.numpy as jnp
from jax import lax
from jax.experimental import pallas as pl
from jax.experimental.pallas import tpu as pltpu

LANES = 128
SUBLANES = 8


def _round_up(v, m):
    return (v + m - 1) // m * m


def _club_mean_kernel(x_ref, y_ref, w1_ref, b1_ref, w2_ref, b2_ref, part_ref,
                      *, tile_n, n_true, need_mask):
    x = x_ref[...]                                   # [T, Dx_pad] f32
    y = y_ref[...]                                   # [T, Dy_pad] f32

    # p_mu: Linear -> ReLU -> Linear (MXU matmuls, f32 accumulation).
    h = jnp.dot(x, w1_ref[...], preferred_element_type=jnp.float32) + b1_ref[...]
    h = jnp.maximum(h, 0.0)
    mu = jnp.dot(h, w2_ref[...], preferred_element_type=jnp.float32) + b2_ref[...]

    if need_mask:
        # Rows beyond the true sample count: the biases make mu non-zero on
        # padded x rows, so zero them explicitly (y pad rows are already 0).
        row = (lax.broadcasted_iota(jnp.int32, (tile_n, 1), 0)
               + pl.program_id(0) * tile_n)
        mu = jnp.where(row < n_true, mu, 0.0)

    # Per-tile, per-feature partial sums:
    #   row 0: sum_i mu[i,d] * y[i,d]
    #   row 1: sum_i y[i,d]
    #   row 2: sum_i mu[i,d]
    pmy = jnp.sum(mu * y, axis=0, keepdims=True)     # [1, Dy_pad]
    sy = jnp.sum(y, axis=0, keepdims=True)           # [1, Dy_pad]
    smu = jnp.sum(mu, axis=0, keepdims=True)         # [1, Dy_pad]

    part_ref[...] = jnp.zeros_like(part_ref)
    part_ref[0, 0:1, :] = pmy
    part_ref[0, 1:2, :] = sy
    part_ref[0, 2:3, :] = smu


def club_mean_forward(x, y, w1_t, b1, w2_t, b2, *, tile_n=256):
    """CLUBMean forward.

    x: [N, x_dim], y: [N, y_dim], w1_t: [x_dim, H], b1: [1, H] (or [H]),
    w2_t: [H, y_dim], b2: [1, y_dim] (or [y_dim]).  Returns a scalar.
    """
    f32 = jnp.float32
    n, dx = x.shape
    dy = y.shape[1]
    h_dim = w1_t.shape[1]

    x = x.astype(f32)
    y = y.astype(f32)
    w1_t = w1_t.astype(f32)
    w2_t = w2_t.astype(f32)
    b1 = jnp.reshape(b1, (1, -1)).astype(f32)
    b2 = jnp.reshape(b2, (1, -1)).astype(f32)

    # Pad feature dims to lane multiples (zero padding is exactly neutral here)
    # and rows to a multiple of the row tile.
    dx_p = _round_up(dx, LANES)
    h_p = _round_up(h_dim, LANES)
    dy_p = _round_up(dy, LANES)
    tile_n = max(SUBLANES, int(tile_n))
    n_p = _round_up(n, tile_n)
    num_tiles = n_p // tile_n

    x_p = jnp.pad(x, ((0, n_p - n), (0, dx_p - dx)))
    y_p = jnp.pad(y, ((0, n_p - n), (0, dy_p - dy)))
    w1_p = jnp.pad(w1_t, ((0, dx_p - dx), (0, h_p - h_dim)))
    b1_p = jnp.pad(b1, ((0, 0), (0, h_p - h_dim)))
    w2_p = jnp.pad(w2_t, ((0, h_p - h_dim), (0, dy_p - dy)))
    b2_p = jnp.pad(b2, ((0, 0), (0, dy_p - dy)))

    kernel = functools.partial(
        _club_mean_kernel, tile_n=tile_n, n_true=n, need_mask=(n_p != n))

    partials = pl.pallas_call(
        kernel,
        out_shape=jax.ShapeDtypeStruct((num_tiles, SUBLANES, dy_p), f32),
        grid=(num_tiles,),
        in_specs=[
            pl.BlockSpec((tile_n, dx_p), lambda i: (i, 0)),   # x row tile
            pl.BlockSpec((tile_n, dy_p), lambda i: (i, 0)),   # y row tile
            pl.BlockSpec((dx_p, h_p), lambda i: (0, 0)),      # w1 (resident)
            pl.BlockSpec((1, h_p), lambda i: (0, 0)),         # b1 (resident)
            pl.BlockSpec((h_p, dy_p), lambda i: (0, 0)),      # w2 (resident)
            pl.BlockSpec((1, dy_p), lambda i: (0, 0)),        # b2 (resident)
        ],
        out_specs=pl.BlockSpec((1, SUBLANES, dy_p), lambda i: (i, 0, 0)),
        compiler_params=pltpu.CompilerParams(
            dimension_semantics=("parallel",)),
    )(x_p, y_p, w1_p, b1_p, w2_p, b2_p)

    # Tiny final combine over row tiles (num_tiles x 8 x Dy_pad floats).
    sums = jnp.sum(partials, axis=0)                 # [8, Dy_pad]
    sum_mu_y = jnp.sum(sums[0])
    sy = sums[1]
    smu = sums[2]
    total = sum_mu_y - jnp.sum(sy * smu) / n
    return total / n


def reference_forward(x, y, w1_t, b1, w2_t, b2):
    # Pure-JAX reference mirroring the PyTorch forward exactly (pairwise form).
    hp = lax.Precision.HIGHEST
    h = jnp.maximum(jnp.dot(x, w1_t, precision=hp) + b1, 0.0)
    mu = jnp.dot(h, w2_t, precision=hp) + b2
    positive = -(mu - y) ** 2 / 2.0
    negative = -jnp.mean((y[None, :, :] - mu[:, None, :]) ** 2, axis=1) / 2.0
    return jnp.mean(positive.sum(-1) - negative.sum(-1))


if __name__ == "__main__":
    # Small but representative shapes; N deliberately not a multiple of the
    # row tile so the padded-row masking path is exercised.
    n, x_dim, y_dim, hidden = 500, 32, 16, 64
    tile_n = 256

    key = jax.random.PRNGKey(0)
    kx, ky, kw1, kb1, kw2, kb2 = jax.random.split(key, 6)

    x = jax.random.normal(kx, (n, x_dim), dtype=jnp.float32)
    y = jax.random.normal(ky, (n, y_dim), dtype=jnp.float32)

    # Deterministic PyTorch-nn.Linear-style init, stored pre-transposed [in, out].
    bound1 = 1.0 / (x_dim ** 0.5)
    w1_t = jax.random.uniform(kw1, (x_dim, hidden), jnp.float32, -bound1, bound1)
    b1 = jax.random.uniform(kb1, (1, hidden), jnp.float32, -bound1, bound1)
    bound2 = 1.0 / (hidden ** 0.5)
    w2_t = jax.random.uniform(kw2, (hidden, y_dim), jnp.float32, -bound2, bound2)
    b2 = jax.random.uniform(kb2, (1, y_dim), jnp.float32, -bound2, bound2)

    fwd = jax.jit(functools.partial(club_mean_forward, tile_n=tile_n))
    out = jax.block_until_ready(fwd(x, y, w1_t, b1, w2_t, b2))

    ref = jax.block_until_ready(reference_forward(x, y, w1_t, b1, w2_t, b2))
    assert jnp.allclose(out, ref, rtol=1e-3, atol=3e-4), (out, ref)

    print("KERNEL_OK")
</pallas_src>

<mosaic_0001>
module attributes {stable_mosaic.version = 11 : i64} {
  func.func @_club_mean_kernel(%arg0: i32, %arg1: memref<256x128xf32, #tpu.memory_space<vmem>>, %arg2: memref<256x128xf32, #tpu.memory_space<vmem>>, %arg3: memref<128x128xf32, #tpu.memory_space<vmem>>, %arg4: memref<1x128xf32, #tpu.memory_space<vmem>>, %arg5: memref<128x128xf32, #tpu.memory_space<vmem>>, %arg6: memref<1x128xf32, #tpu.memory_space<vmem>>, %arg7: memref<1x8x128xf32, #tpu.memory_space<vmem>>) attributes {dimension_semantics = [#tpu.dimension_semantics<parallel>], iteration_bounds = array<i64: 2>, scalar_prefetch = 0 : i64, scratch_operands = 0 : i64, tpu.core_type = #tpu.core_type<tc>, window_params = [{transform_indices = @transform_0, window_bounds = array<i64: 256, 128>}, {transform_indices = @transform_1, window_bounds = array<i64: 256, 128>}, {pipeline_mode = #tpu.pipeline_mode<synchronous>, transform_indices = @transform_2, window_bounds = array<i64: 128, 128>}, {pipeline_mode = #tpu.pipeline_mode<synchronous>, transform_indices = @transform_3, window_bounds = array<i64: 1, 128>}, {pipeline_mode = #tpu.pipeline_mode<synchronous>, transform_indices = @transform_4, window_bounds = array<i64: 128, 128>}, {pipeline_mode = #tpu.pipeline_mode<synchronous>, transform_indices = @transform_5, window_bounds = array<i64: 1, 128>}, {transform_indices = @transform_6, window_bounds = array<i64: 1, 8, 128>}]} {
    %c0 = arith.constant 0 : index
    %c0_0 = arith.constant 0 : index
    %0 = vector.load %arg1[%c0, %c0_0] : memref<256x128xf32, #tpu.memory_space<vmem>>, vector<256x128xf32>
    %c0_1 = arith.constant 0 : index
    %c0_2 = arith.constant 0 : index
    %1 = vector.load %arg2[%c0_1, %c0_2] : memref<256x128xf32, #tpu.memory_space<vmem>>, vector<256x128xf32>
    %c0_3 = arith.constant 0 : index
    %c0_4 = arith.constant 0 : index
    %2 = vector.load %arg3[%c0_3, %c0_4] : memref<128x128xf32, #tpu.memory_space<vmem>>, vector<128x128xf32>
    %cst = arith.constant dense<0.000000e+00> : vector<256x128xf32>
    %3 = tpu.matmul %0, %2, %cst {dimension_numbers = #tpu.dot_dimension_numbers<[1], [0], [0], [1], [0, 0, 1, 1], [], []>} : vector<256x128xf32>, vector<128x128xf32>, vector<256x128xf32> -> vector<256x128xf32>
    %c0_5 = arith.constant 0 : index
    %c0_6 = arith.constant 0 : index
    %4 = vector.load %arg4[%c0_5, %c0_6] : memref<1x128xf32, #tpu.memory_space<vmem>>, vector<1x128xf32>
    %5 = vector.broadcast %4 : vector<1x128xf32> to vector<256x128xf32>
    %6 = arith.addf %3, %5 : vector<256x128xf32>
    %cst_7 = arith.constant 0.000000e+00 : f32
    %7 = vector.broadcast %cst_7 : f32 to vector<256x128xf32>
    %8 = arith.maximumf %6, %7 : vector<256x128xf32>
    %c0_8 = arith.constant 0 : index
    %c0_9 = arith.constant 0 : index
    %9 = vector.load %arg5[%c0_8, %c0_9] : memref<128x128xf32, #tpu.memory_space<vmem>>, vector<128x128xf32>
    %cst_10 = arith.constant dense<0.000000e+00> : vector<256x128xf32>
    %10 = tpu.matmul %8, %9, %cst_10 {dimension_numbers = #tpu.dot_dimension_numbers<[1], [0], [0], [1], [0, 0, 1, 1], [], []>} : vector<256x128xf32>, vector<128x128xf32>, vector<256x128xf32> -> vector<256x128xf32>
    %c0_11 = arith.constant 0 : index
    %c0_12 = arith.constant 0 : index
    %11 = vector.load %arg6[%c0_11, %c0_12] : memref<1x128xf32, #tpu.memory_space<vmem>>, vector<1x128xf32>
    %12 = vector.broadcast %11 : vector<1x128xf32> to vector<256x128xf32>
    %13 = arith.addf %10, %12 : vector<256x128xf32>
    %14 = tpu.iota {dimensions = array<i32: 0>} : vector<256x1xi32>
    %c256_i32 = arith.constant 256 : i32
    %15 = arith.muli %arg0, %c256_i32 : i32
    %16 = vector.broadcast %15 : i32 to vector<256x1xi32>
    %17 = arith.addi %14, %16 : vector<256x1xi32>
    %c500_i32 = arith.constant 500 : i32
    %18 = vector.broadcast %c500_i32 : i32 to vector<256x1xi32>
    %19 = arith.cmpi slt, %17, %18 : vector<256x1xi32>
    %cst_13 = arith.constant 0.000000e+00 : f32
    %20 = vector.shape_cast %19 : vector<256x1xi1> to vector<256x1xi1>
    %21 = vector.broadcast %20 : vector<256x1xi1> to vector<256x128xi1>
    %22 = vector.broadcast %cst_13 : f32 to vector<256x128xf32>
    %23 = arith.select %21, %13, %22 : vector<256x128xi1>, vector<256x128xf32>
    %24 = arith.mulf %23, %1 : vector<256x128xf32>
    %cst_14 = arith.constant dense<0.000000e+00> : vector<128xf32>
    %25 = vector.multi_reduction <add>, %24, %cst_14 [0] : vector<256x128xf32> to vector<128xf32>
    %26 = vector.shape_cast %25 : vector<128xf32> to vector<1x128xf32>
    %cst_15 = arith.constant dense<0.000000e+00> : vector<128xf32>
    %27 = vector.multi_reduction <add>, %1, %cst_15 [0] : vector<256x128xf32> to vector<128xf32>
    %28 = vector.shape_cast %27 : vector<128xf32> to vector<1x128xf32>
    %cst_16 = arith.constant dense<0.000000e+00> : vector<128xf32>
    %29 = vector.multi_reduction <add>, %23, %cst_16 [0] : vector<256x128xf32> to vector<128xf32>
    %30 = vector.shape_cast %29 : vector<128xf32> to vector<1x128xf32>
    %cst_17 = arith.constant 0.000000e+00 : f32
    %31 = vector.broadcast %cst_17 : f32 to vector<1x8x128xf32>
    %c0_18 = arith.constant 0 : index
    %c0_19 = arith.constant 0 : index
    %c0_20 = arith.constant 0 : index
    %32 = vector.load %arg7[%c0_18, %c0_19, %c0_20] : memref<1x8x128xf32, #tpu.memory_space<vmem>>, vector<1x8x128xf32>
    tpu.vector_store %arg7[%c0_18, %c0_19, %c0_20], %31 {strides = array<i32>} : memref<1x8x128xf32, #tpu.memory_space<vmem>>, vector<1x8x128xf32>,
    %c0_21 = arith.constant 0 : index
    %c0_22 = arith.constant 0 : index
    %c0_23 = arith.constant 0 : index
    %33 = vector.load %arg7[%c0_21, %c0_22, %c0_23] : memref<1x8x128xf32, #tpu.memory_space<vmem>>, vector<1x1x128xf32>
    %34 = vector.shape_cast %33 : vector<1x1x128xf32> to vector<1x128xf32>
    %35 = vector.shape_cast %26 : vector<1x128xf32> to vector<1x1x128xf32>
    tpu.vector_store %arg7[%c0_21, %c0_22, %c0_23], %35 {strides = array<i32>} : memref<1x8x128xf32, #tpu.memory_space<vmem>>, vector<1x1x128xf32>,
    %c0_24 = arith.constant 0 : index
    %c1 = arith.constant 1 : index
    %c0_25 = arith.constant 0 : index
    %36 = vector.load %arg7[%c0_24, %c1, %c0_25] : memref<1x8x128xf32, #tpu.memory_space<vmem>>, vector<1x1x128xf32>
    %37 = vector.shape_cast %36 : vector<1x1x128xf32> to vector<1x128xf32>
    %38 = vector.shape_cast %28 : vector<1x128xf32> to vector<1x1x128xf32>
    tpu.vector_store %arg7[%c0_24, %c1, %c0_25], %38 {strides = array<i32>} : memref<1x8x128xf32, #tpu.memory_space<vmem>>, vector<1x1x128xf32>,
    %c0_26 = arith.constant 0 : index
    %c2 = arith.constant 2 : index
    %c0_27 = arith.constant 0 : index
    %39 = vector.load %arg7[%c0_26, %c2, %c0_27] : memref<1x8x128xf32, #tpu.memory_space<vmem>>, vector<1x1x128xf32>
    %40 = vector.shape_cast %39 : vector<1x1x128xf32> to vector<1x128xf32>
    %41 = vector.shape_cast %30 : vector<1x128xf32> to vector<1x1x128xf32>
    tpu.vector_store %arg7[%c0_26, %c2, %c0_27], %41 {strides = array<i32>} : memref<1x8x128xf32, #tpu.memory_space<vmem>>, vector<1x1x128xf32>,
    return
  }
  func.func @transform_0(%arg0: i32) -> (i32, i32) {
    %c0_i32 = arith.constant 0 : i32
    %c0_i32_0 = arith.constant 0 : i32
    return %arg0, %c0_i32 : i32, i32
  }
  func.func @transform_1(%arg0: i32) -> (i32, i32) {
    %c0_i32 = arith.constant 0 : i32
    %c0_i32_0 = arith.constant 0 : i32
    return %arg0, %c0_i32 : i32, i32
  }
  func.func @transform_2(%arg0: i32) -> (i32, i32) {
    %c0_i32 = arith.constant 0 : i32
    %c0_i32_0 = arith.constant 0 : i32
    %c0_i32_1 = arith.constant 0 : i32
    return %c0_i32, %c0_i32_0 : i32, i32
  }
  func.func @transform_3(%arg0: i32) -> (i32, i32) {
    %c0_i32 = arith.constant 0 : i32
    %c0_i32_0 = arith.constant 0 : i32
    %c0_i32_1 = arith.constant 0 : i32
    return %c0_i32, %c0_i32_0 : i32, i32
  }
  func.func @transform_4(%arg0: i32) -> (i32, i32) {
    %c0_i32 = arith.constant 0 : i32
    %c0_i32_0 = arith.constant 0 : i32
    %c0_i32_1 = arith.constant 0 : i32
    return %c0_i32, %c0_i32_0 : i32, i32
  }
  func.func @transform_5(%arg0: i32) -> (i32, i32) {
    %c0_i32 = arith.constant 0 : i32
    %c0_i32_0 = arith.constant 0 : i32
    %c0_i32_1 = arith.constant 0 : i32
    return %c0_i32, %c0_i32_0 : i32, i32
  }
  func.func @transform_6(%arg0: i32) -> (i32, i32, i32) {
    %c0_i32 = arith.constant 0 : i32
    %c0_i32_0 = arith.constant 0 : i32
    %c0_i32_1 = arith.constant 0 : i32
    return %arg0, %c0_i32, %c0_i32_0 : i32, i32, i32
  }
}

</mosaic_0001>

<llo_original>
// kernel: club_mean_forward.1
$region0: #{club_mean_forward.1}
  #allocation0 [shape = 'u32[]', space=smem, size = 0x4, offset = 0x4, fixed_abs, tag = 'smem constant byte address 0x4 - core index']
  #allocation1 [shape = 'u32[144,128]{1,0:T(1,128)}', space=vmem, size = 0x12000, scoped, tag = 'internal scratch']
  %s0 = inlined_call_operand.vmem [shape: f32[512,128], index: 0, kind: input, shape index: {}]
  %s1 = inlined_call_operand.vmem [shape: f32[512,128], index: 1, kind: input, shape index: {}]
  %s2 = inlined_call_operand.vmem [shape: f32[128,128], index: 2, kind: input, shape index: {}]
  %s3 = inlined_call_operand.vmem [shape: f32[1,128], index: 3, kind: input, shape index: {}]
  %s4 = inlined_call_operand.vmem [shape: f32[128,128], index: 4, kind: input, shape index: {}]
  %s5 = inlined_call_operand.vmem [shape: f32[1,128], index: 5, kind: input, shape index: {}]
  %s6 = inlined_call_operand.vmem [shape: f32[2,8,128], index: 6, kind: output, shape index: {}]
  %s7 = sld [smem:[#allocation0]]
  $region57: #{club_mean_forward.1} parent=0
    _
  %s9 = ssub.s32 1, %s7
  %s10 = scalar_select 0, %s9, %s7
  loop: start=0, step=1, limit=4
  $region2: #{club_mean_forward.1} parent=0 // loop_pre_header
    _
  $region3: #{club_mean_forward.1} parent=0 // loop_header
    %s12 = sphi 0, %s16
    %p13 = scmp.ge.s32.totalorder %s12, 4
    %s22 = sphi 0, %s24
    %s25 = sphi 0, %s22
    %s26 = sphi 0, %s25
    %s42 = sphi 0, %s26
    %s48 = sphi 0, %s50
    %s51 = sphi 0, %s48
    %s52 = sphi 0, %s51
    %s68 = sphi 0, %s52
    %s72 = sphi 0, %s72
    %s74 = sphi 0, %s72
    %s75 = sphi 0, %s74
    %s89 = sphi 0, %s75
    %s93 = sphi 0, %s93
    %s95 = sphi 0, %s93
    %s96 = sphi 0, %s95
    %s110 = sphi 0, %s96
    %s114 = sphi 0, %s114
    %s116 = sphi 0, %s114
    %s117 = sphi 0, %s116
    %s131 = sphi 0, %s117
    %s135 = sphi 0, %s135
    %s137 = sphi 0, %s135
    %s138 = sphi 0, %s137
    %s152 = sphi 0, %s138
    %s158 = sphi 0, %s160
    %s161 = sphi 0, %s158
    %s162 = sphi 0, %s161
    %s178 = sphi 0, %s162
  $region4: #{club_mean_forward.1} parent=0 // loop_header_branch
    %15 = sbr.rel (%p13) target = $region8
  $region5: #{club_mean_forward.1} parent=0 // loop_body
    %s17 = ssub.s32 %s12, 1
    %s18 = ssub.s32 %s12, 2
    %s19 = sadd.s32 %s12, 1
    %s20 = ssub.s32 %s12, %s19
    %p21 = scmp.eq.s32.totalorder %s20, 0
    %s23 = sadd.s32 %s22, 1
    %s24 = scalar_select %p21, %s22, %s23
    %p27 = pneg %p21
    %p28 = scmp.eq.s32.totalorder %s12, 1
    %p29 = por %p27, %p28
    %p30 = scmp.ne.s32.totalorder %s22, %s25
    %p31 = scmp.eq.s32.totalorder %s12, 0
    %p32 = por %p30, %p31
    %p33 = scmp.ne.s32.totalorder %s22, %s25
    %p34 = scmp.eq.s32.totalorder %s17, 1
    %p35 = por %p33, %p34
    %p36 = scmp.ne.s32.totalorder %s25, %s26
    %p37 = scmp.eq.s32.totalorder %s17, 0
    %p38 = por %p36, %p37
    %p39 = scmp.ne.s32.totalorder %s25, %s26
    %p40 = scmp.eq.s32.totalorder %s18, 1
    %p41 = por %p39, %p40
    %p43 = scmp.ne.s32.totalorder %s26, %s42
    %p44 = scmp.eq.s32.totalorder %s18, 0
    %p45 = por %p43, %p44
    %s46 = ssub.s32 %s12, %s19
    %p47 = scmp.eq.s32.totalorder %s46, 0
    %s49 = sadd.s32 %s48, 1
    %s50 = scalar_select %p47, %s48, %s49
    %p53 = pneg %p47
    %p54 = scmp.eq.s32.totalorder %s12, 1
    %p55 = por %p53, %p54
    %p56 = scmp.ne.s32.totalorder %s48, %s51
    %p57 = scmp.eq.s32.totalorder %s12, 0
    %p58 = por %p56, %p57
    %p59 = scmp.ne.s32.totalorder %s48, %s51
    %p60 = scmp.eq.s32.totalorder %s17, 1
    %p61 = por %p59, %p60
    %p62 = scmp.ne.s32.totalorder %s51, %s52
    %p63 = scmp.eq.s32.totalorder %s17, 0
    %p64 = por %p62, %p63
    %p65 = scmp.ne.s32.totalorder %s51, %s52
    %p66 = scmp.eq.s32.totalorder %s18, 1
    %p67 = por %p65, %p66
    %p69 = scmp.ne.s32.totalorder %s52, %s68
    %p70 = scmp.eq.s32.totalorder %s18, 0
    %p71 = por %p69, %p70
    %s73 = sadd.s32 %s72, 1
    %p76 = scmp.eq.s32.totalorder %s12, 1
    %p77 = scmp.ne.s32.totalorder %s72, %s74
    %p78 = scmp.eq.s32.totalorder %s12, 0
    %p79 = por %p77, %p78
    %p80 = scmp.ne.s32.totalorder %s72, %s74
    %p81 = scmp.eq.s32.totalorder %s17, 1
    %p82 = por %p80, %p81
    %p83 = scmp.ne.s32.totalorder %s74, %s75
    %p84 = scmp.eq.s32.totalorder %s17, 0
    %p85 = por %p83, %p84
    %p86 = scmp.ne.s32.totalorder %s74, %s75
    %p87 = scmp.eq.s32.totalorder %s18, 1
    %p88 = por %p86, %p87
    %p90 = scmp.ne.s32.totalorder %s75, %s89
    %p91 = scmp.eq.s32.totalorder %s18, 0
    %p92 = por %p90, %p91
    %s94 = sadd.s32 %s93, 1
    %p97 = scmp.eq.s32.totalorder %s12, 1
    %p98 = scmp.ne.s32.totalorder %s93, %s95
    %p99 = scmp.eq.s32.totalorder %s12, 0
    %p100 = por %p98, %p99
    %p101 = scmp.ne.s32.totalorder %s93, %s95
    %p102 = scmp.eq.s32.totalorder %s17, 1
    %p103 = por %p101, %p102
    %p104 = scmp.ne.s32.totalorder %s95, %s96
    %p105 = scmp.eq.s32.totalorder %s17, 0
    %p106 = por %p104, %p105
    %p107 = scmp.ne.s32.totalorder %s95, %s96
    %p108 = scmp.eq.s32.totalorder %s18, 1
    %p109 = por %p107, %p108
    %p111 = scmp.ne.s32.totalorder %s96, %s110
    %p112 = scmp.eq.s32.totalorder %s18, 0
    %p113 = por %p111, %p112
    %s115 = sadd.s32 %s114, 1
    %p118 = scmp.eq.s32.totalorder %s12, 1
    %p119 = scmp.ne.s32.totalorder %s114, %s116
    %p120 = scmp.eq.s32.totalorder %s12, 0
    %p121 = por %p119, %p120
    %p122 = scmp.ne.s32.totalorder %s114, %s116
    %p123 = scmp.eq.s32.totalorder %s17, 1
    %p124 = por %p122, %p123
    %p125 = scmp.ne.s32.totalorder %s116, %s117
    %p126 = scmp.eq.s32.totalorder %s17, 0
    %p127 = por %p125, %p126
    %p128 = scmp.ne.s32.totalorder %s116, %s117
    %p129 = scmp.eq.s32.totalorder %s18, 1
    %p130 = por %p128, %p129
    %p132 = scmp.ne.s32.totalorder %s117, %s131
    %p133 = scmp.eq.s32.totalorder %s18, 0
    %p134 = por %p132, %p133
    %s136 = sadd.s32 %s135, 1
    %p139 = scmp.eq.s32.totalorder %s12, 1
    %p140 = scmp.ne.s32.totalorder %s135, %s137
    %p141 = scmp.eq.s32.totalorder %s12, 0
    %p142 = por %p140, %p141
    %p143 = scmp.ne.s32.totalorder %s135, %s137
    %p144 = scmp.eq.s32.totalorder %s17, 1
    %p145 = por %p143, %p144
    %p146 = scmp.ne.s32.totalorder %s137, %s138
    %p147 = scmp.eq.s32.totalorder %s17, 0
    %p148 = por %p146, %p147
    %p149 = scmp.ne.s32.totalorder %s137, %s138
    %p150 = scmp.eq.s32.totalorder %s18, 1
    %p151 = por %p149, %p150
    %p153 = scmp.ne.s32.totalorder %s138, %s152
    %p154 = scmp.eq.s32.totalorder %s18, 0
    %p155 = por %p153, %p154
    %s156 = ssub.s32 %s12, %s19
    %p157 = scmp.eq.s32.totalorder %s156, 0
    %s159 = sadd.s32 %s158, 1
    %s160 = scalar_select %p157, %s158, %s159
    %p163 = pneg %p157
    %p164 = scmp.eq.s32.totalorder %s12, 1
    %p165 = por %p163, %p164
    %p166 = scmp.ne.s32.totalorder %s158, %s161
    %p167 = scmp.eq.s32.totalorder %s12, 0
    %p168 = por %p166, %p167
    %p169 = scmp.ne.s32.totalorder %s158, %s161
    %p170 = scmp.eq.s32.totalorder %s17, 1
    %p171 = por %p169, %p170
    %p172 = scmp.ne.s32.totalorder %s161, %s162
    %p173 = scmp.eq.s32.totalorder %s17, 0
    %p174 = por %p172, %p173
    %p175 = scmp.ne.s32.totalorder %s161, %s162
    %p176 = scmp.eq.s32.totalorder %s18, 1
    %p177 = por %p175, %p176
    %p179 = scmp.ne.s32.totalorder %s162, %s178
    %p180 = scmp.eq.s32.totalorder %s18, 0
    %p181 = por %p179, %p180
    %p182 = scmp.le.s32.totalorder 1, %s12
    %p183 = scmp.lt.s32.totalorder %s12, 3
    %p184 = pnand %p182, %p183
    %p185 = pneg %p184
    // Predicated region
    $region9: #{club_mean_forward.1} parent=5 // pred_check
      _
    $region10: #{club_mean_forward.1} parent=5 // pred_check_branch
      %187 = sbr.rel (%p184) target = $region12
    $region11: #{club_mean_forward.1} parent=5 // pred_region
      %s188 = ssub.s32 %s12, 1
      // Predicated region
      $region13: #{club_mean_forward.1} parent=11 // pred_check
        %p189 = pneg %p85
      $region14: #{club_mean_forward.1} parent=11 // pred_check_branch
        %191 = sbr.rel (%p189) target = $region16
      $region15: #{club_mean_forward.1} parent=11 // pred_region
        _
      $region16: #{club_mean_forward.1} parent=11 // pred_fallthru
        _
      // Predicated region
      $region17: #{club_mean_forward.1} parent=11 // pred_check
        %p192 = pneg %p106
      $region18: #{club_mean_forward.1} parent=11 // pred_check_branch
        %194 = sbr.rel (%p192) target = $region20
      $region19: #{club_mean_forward.1} parent=11 // pred_region
        _
      $region20: #{club_mean_forward.1} parent=11 // pred_fallthru
        _
      // Predicated region
      $region21: #{club_mean_forward.1} parent=11 // pred_check
        %p195 = pneg %p127
      $region22: #{club_mean_forward.1} parent=11 // pred_check_branch
        %197 = sbr.rel (%p195) target = $region24
      $region23: #{club_mean_forward.1} parent=11 // pred_region
        _
      $region24: #{club_mean_forward.1} parent=11 // pred_fallthru
        _
      // Predicated region
      $region25: #{club_mean_forward.1} parent=11 // pred_check
        %p198 = pneg %p148
      $region26: #{club_mean_forward.1} parent=11 // pred_check_branch
        %200 = sbr.rel (%p198) target = $region28
      $region27: #{club_mean_forward.1} parent=11 // pred_region
        _
      $region28: #{club_mean_forward.1} parent=11 // pred_fallthru
        _
    $region12: #{club_mean_forward.1} parent=5 // pred_fallthru
      _
    %p201 = scmp.lt.s32.totalorder %s12, 2
    // Predicated region
    $region29: #{club_mean_forward.1} parent=5 // pred_check
      %p202 = pneg %p201
    $region30: #{club_mean_forward.1} parent=5 // pred_check_branch
      %204 = sbr.rel (%p202) target = $region32
    $region31: #{club_mean_forward.1} parent=5 // pred_region
      // Predicated region
      $region33: #{club_mean_forward.1} parent=31 // pred_check
        %p205 = pneg %p32
      $region34: #{club_mean_forward.1} parent=31 // pred_check_branch
        %207 = sbr.rel (%p205) target = $region36
      $region35: #{club_mean_forward.1} parent=31 // pred_region
        %s208 = smul.u32 32, %s12
        %p209 = scmp.lt.s32.totalorder %s208, 63
        %s210 = scalar_select %p209, %s208, 63
        %s211 = smul.addr %s210, 8
        %s212 = scalar_lea.vmem %s0, %s211
        %s213 = smul.u32 32, %s12
      $region36: #{club_mean_forward.1} parent=31 // pred_fallthru
        _
      // Predicated region
      $region37: #{club_mean_forward.1} parent=31 // pred_check
        %p214 = pneg %p58
      $region38: #{club_mean_forward.1} parent=31 // pred_check_branch
        %216 = sbr.rel (%p214) target = $region40
      $region39: #{club_mean_forward.1} parent=31 // pred_region
        %s217 = smul.u32 32, %s12
        %p218 = scmp.lt.s32.totalorder %s217, 63
        %s219 = scalar_select %p218, %s217, 63
        %s220 = smul.addr %s219, 8
        %s221 = scalar_lea.vmem %s1, %s220
        %s222 = smul.u32 32, %s12
      $region40: #{club_mean_forward.1} parent=31 // pred_fallthru
        _
    $region32: #{club_mean_forward.1} parent=5 // pred_fallthru
      _
    %p223 = scmp.le.s32.totalorder 1, %s12
    %p224 = scmp.lt.s32.totalorder %s12, 3
    %p225 = pnand %p223, %p224
    %p226 = pneg %p225
    // Predicated region
    $region41: #{club_mean_forward.1} parent=5 // pred_check
      _
    $region42: #{club_mean_forward.1} parent=5 // pred_check_branch
      %228 = sbr.rel (%p225) target = $region44
    $region43: #{club_mean_forward.1} parent=5 // pred_region
      %s229 = ssub.s32 %s12, 1
      %s230 = smul.u32 32, %s17
      %p231 = scmp.lt.s32.totalorder %s230, 63
      %s232 = scalar_select %p231, %s230, 63
      %s233 = smul.addr %s232, 8
      %s234 = scalar_lea.vmem %s0, %s233
      %p235 = pneg %p38
      %p236 = pneg %p35
      %s237 = smul.u32 32, %s17
      %p238 = scmp.lt.s32.totalorder %s237, 63
      %s239 = scalar_select %p238, %s237, 63
      %s240 = smul.addr %s239, 8
      %s241 = scalar_lea.vmem %s1, %s240
      %p242 = pneg %p64
      %p243 = pneg %p61
      %p244 = pneg %p85
      %p245 = pneg %p82
      %p246 = pneg %p106
      %p247 = pneg %p103
      %p248 = pneg %p127
      %p249 = pneg %p124
      %p250 = pneg %p148
      %p251 = pneg %p145
      %p252 = pneg %p174
      %p253 = pneg %p171
      %p254 = scmp.lt.s32.totalorder %s17, 1
      %s255 = scalar_select %p254, %s17, 1
      %s256 = smul.addr %s255, 8
      %s257 = scalar_lea.vmem %s6, %s256
      %s258 = smul.u32 32, %s17
      %p259 = scmp.lt.s32.totalorder %s258, 63
      %s260 = scalar_select %p259, %s258, 63
      %s261 = smul.addr %s260, 8
      %s262 = scalar_lea.vmem %s0, %s261
      %s263 = smul.u32 32, %s17
      %s264 = smul.u32 32, %s17
      %p265 = scmp.lt.s32.totalorder %s264, 63
      %s266 = scalar_select %p265, %s264, 63
      %s267 = smul.addr %s266, 8
      %s268 = scalar_lea.vmem %s1, %s267
      %s269 = smul.u32 32, %s17
      %p270 = scmp.lt.s32.totalorder %s17, 1
      %s271 = scalar_select %p270, %s17, 1
      %s272 = smul.addr %s271, 8
      %s273 = scalar_lea.vmem %s6, %s272
      %v274 = vld [vmem:[%s262] sm:$0xff]
      %v275 = vld [vmem:[%s262 + $0x8] sm:$0xff]
      %v276 = vld [vmem:[%s262 + $0x10] sm:$0xff]
      %v277 = vld [vmem:[%s262 + $0x18] sm:$0xff]
      %v278 = vld [vmem:[%s262 + $0x20] sm:$0xff]
      %v279 = vld [vmem:[%s262 + $0x28] sm:$0xff]
      %v280 = vld [vmem:[%s262 + $0x30] sm:$0xff]
      %v281 = vld [vmem:[%s262 + $0x38] sm:$0xff]
      %v282 = vld [vmem:[%s262 + $0x40] sm:$0xff]
      %v283 = vld [vmem:[%s262 + $0x48] sm:$0xff]
      %v284 = vld [vmem:[%s262 + $0x50] sm:$0xff]
      %v285 = vld [vmem:[%s262 + $0x58] sm:$0xff]
      %v286 = vld [vmem:[%s262 + $0x60] sm:$0xff]
      %v287 = vld [vmem:[%s262 + $0x68] sm:$0xff]
      %v288 = vld [vmem:[%s262 + $0x70] sm:$0xff]
      %v289 = vld [vmem:[%s262 + $0x78] sm:$0xff]
      %v290 = vld [vmem:[%s262 + $0x80] sm:$0xff]
      %v291 = vld [vmem:[%s262 + $0x88] sm:$0xff]
      %v292 = vld [vmem:[%s262 + $0x90] sm:$0xff]
      %v293 = vld [vmem:[%s262 + $0x98] sm:$0xff]
      %v294 = vld [vmem:[%s262 + $0xa0] sm:$0xff]
      %v295 = vld [vmem:[%s262 + $0xa8] sm:$0xff]
      %v296 = vld [vmem:[%s262 + $0xb0] sm:$0xff]
      %v297 = vld [vmem:[%s262 + $0xb8] sm:$0xff]
      %v298 = vld [vmem:[%s262 + $0xc0] sm:$0xff]
      %v299 = vld [vmem:[%s262 + $0xc8] sm:$0xff]
      %v300 = vld [vmem:[%s262 + $0xd0] sm:$0xff]
      %v301 = vld [vmem:[%s262 + $0xd8] sm:$0xff]
      %v302 = vld [vmem:[%s262 + $0xe0] sm:$0xff]
      %v303 = vld [vmem:[%s262 + $0xe8] sm:$0xff]
      %v304 = vld [vmem:[%s262 + $0xf0] sm:$0xff]
      %v305 = vld [vmem:[%s262 + $0xf8] sm:$0xff]
      %v306 = vld [vmem:[%s268] sm:$0xff]
      %v307 = vld [vmem:[%s268 + $0x8] sm:$0xff]
      %v308 = vld [vmem:[%s268 + $0x10] sm:$0xff]
      %v309 = vld [vmem:[%s268 + $0x18] sm:$0xff]
      %v310 = vld [vmem:[%s268 + $0x20] sm:$0xff]
      %v311 = vld [vmem:[%s268 + $0x28] sm:$0xff]
      %v312 = vld [vmem:[%s268 + $0x30] sm:$0xff]
      %v313 = vld [vmem:[%s268 + $0x38] sm:$0xff]
      %v314 = vld [vmem:[%s268 + $0x40] sm:$0xff]
      %v315 = vld [vmem:[%s268 + $0x48] sm:$0xff]
      %v316 = vld [vmem:[%s268 + $0x50] sm:$0xff]
      %v317 = vld [vmem:[%s268 + $0x58] sm:$0xff]
      %v318 = vld [vmem:[%s268 + $0x60] sm:$0xff]
      %v319 = vld [vmem:[%s268 + $0x68] sm:$0xff]
      %v320 = vld [vmem:[%s268 + $0x70] sm:$0xff]
      %v321 = vld [vmem:[%s268 + $0x78] sm:$0xff]
      %v322 = vld [vmem:[%s268 + $0x80] sm:$0xff]
      %v323 = vld [vmem:[%s268 + $0x88] sm:$0xff]
      %v324 = vld [vmem:[%s268 + $0x90] sm:$0xff]
      %v325 = vld [vmem:[%s268 + $0x98] sm:$0xff]
      %v326 = vld [vmem:[%s268 + $0xa0] sm:$0xff]
      %v327 = vld [vmem:[%s268 + $0xa8] sm:$0xff]
      %v328 = vld [vmem:[%s268 + $0xb0] sm:$0xff]
      %v329 = vld [vmem:[%s268 + $0xb8] sm:$0xff]
      %v330 = vld [vmem:[%s268 + $0xc0] sm:$0xff]
      %v331 = vld [vmem:[%s268 + $0xc8] sm:$0xff]
      %v332 = vld [vmem:[%s268 + $0xd0] sm:$0xff]
      %v333 = vld [vmem:[%s268 + $0xd8] sm:$0xff]
      %v334 = vld [vmem:[%s268 + $0xe0] sm:$0xff]
      %v335 = vld [vmem:[%s268 + $0xe8] sm:$0xff]
      %v336 = vld [vmem:[%s268 + $0xf0] sm:$0xff]
      %v337 = vld [vmem:[%s268 + $0xf8] sm:$0xff]
      %v338 = vld [vmem:[%s2] sm:$0xff]
      %v339 = vld [vmem:[%s2 + $0x8] sm:$0xff]
      %v340 = vld [vmem:[%s2 + $0x10] sm:$0xff]
      %v341 = vld [vmem:[%s2 + $0x18] sm:$0xff]
      %v342 = vld [vmem:[%s2 + $0x20] sm:$0xff]
      %v343 = vld [vmem:[%s2 + $0x28] sm:$0xff]
      %v344 = vld [vmem:[%s2 + $0x30] sm:$0xff]
      %v345 = vld [vmem:[%s2 + $0x38] sm:$0xff]
      %v346 = vld [vmem:[%s2 + $0x40] sm:$0xff]
      %v347 = vld [vmem:[%s2 + $0x48] sm:$0xff]
      %v348 = vld [vmem:[%s2 + $0x50] sm:$0xff]
      %v349 = vld [vmem:[%s2 + $0x58] sm:$0xff]
      %v350 = vld [vmem:[%s2 + $0x60] sm:$0xff]
      %v351 = vld [vmem:[%s2 + $0x68] sm:$0xff]
      %v352 = vld [vmem:[%s2 + $0x70] sm:$0xff]
      %v353 = vld [vmem:[%s2 + $0x78] sm:$0xff]
      %v354 = vld [vmem:[%s3] sm:$0x1]
      %v356 = vlaneseq
      %v357 = vshrl.u32 %v356, 7
      %v358 = vsub.s32 0, %v357
      %v359 = vrot.slane %v354, %v358
      %361 = vmatprep.subr.mxu0 0.0
      %362 = vmatpush1.msra.mxu0 %v338
      %363 = vmatprep.subr.mxu0 0.0
      %364 = vmatpush1.msra.mxu0 %v339
      %365 = vmatprep.subr.mxu0 0.0
      %366 = vmatpush1.msra.mxu0 %v340
      %367 = vmatprep.subr.mxu0 0.0
      %368 = vmatpush1.msra.mxu0 %v341
      %369 = vmatprep.subr.mxu0 0.0
      %370 = vmatpush1.msra.mxu0 %v342
      %371 = vmatprep.subr.mxu0 0.0
      %372 = vmatpush1.msra.mxu0 %v343
      %373 = vmatprep.subr.mxu0 0.0
      %374 = vmatpush1.msra.mxu0 %v344
      %375 = vmatprep.subr.mxu0 0.0
      %376 = vmatpush1.msra.mxu0 %v345
      %377 = vmatprep.subr.mxu0 0.0
      %378 = vmatpush1.msra.mxu0 %v346
      %379 = vmatprep.subr.mxu0 0.0
      %380 = vmatpush1.msra.mxu0 %v347
      %381 = vmatprep.subr.mxu0 0.0
      %382 = vmatpush1.msra.mxu0 %v348
      %383 = vmatprep.subr.mxu0 0.0
      %384 = vmatpush1.msra.mxu0 %v349
      %385 = vmatprep.subr.mxu0 0.0
      %386 = vmatpush1.msra.mxu0 %v350
      %387 = vmatprep.subr.mxu0 0.0
      %388 = vmatpush1.msra.mxu0 %v351
      %389 = vmatprep.subr.mxu0 0.0
      %390 = vmatpush1.msra.mxu0 %v352
      %391 = vmatprep.subr.mxu0 0.0
      %392 = vmatpush1.msra.mxu0 %v353
      %393 = vmatprep.subr.mxu0 0.0
      %394 = vmatpush1.msra.mxu0 0.0
      %395 = vmatprep.subr.mxu0 0.0
      %396 = vmatpush1.msra.mxu0 0.0
      %397 = vmatprep.subr.mxu0 0.0
      %398 = vmatpush1.msra.mxu0 0.0
      %399 = vmatprep.subr.mxu0 0.0
      %400 = vmatpush1.msra.mxu0 0.0
      %401 = vmatprep.subr.mxu0 0.0
      %402 = vmatpush1.msra.mxu0 0.0
      %403 = vmatprep.subr.mxu0 0.0
      %404 = vmatpush1.msra.mxu0 0.0
      %405 = vmatprep.subr.mxu0 0.0
      %406 = vmatpush1.msra.mxu0 0.0
      %407 = vmatprep.subr.mxu0 0.0
      %408 = vmatpush1.msra.mxu0 0.0
      %409 = vmatprep.subr.mxu0 0.0
      %410 = vmatpush1.msra.mxu0 0.0
      %411 = vmatprep.subr.mxu0 0.0
      %412 = vmatpush1.msra.mxu0 0.0
      %413 = vmatprep.subr.mxu0 0.0
      %414 = vmatpush1.msra.mxu0 0.0
      %415 = vmatprep.subr.mxu0 0.0
      %416 = vmatpush1.msra.mxu0 0.0
      %417 = vmatprep.subr.mxu0 0.0
      %418 = vmatpush1.msra.mxu0 0.0
      %419 = vmatprep.subr.mxu0 0.0
      %420 = vmatpush1.msra.mxu0 0.0
      %421 = vmatprep.subr.mxu0 0.0
      %422 = vmatpush1.msra.mxu0 0.0
      %423 = vmatprep.subr.mxu0 0.0
      %424 = vmatpush1.msra.mxu0 0.0
      %425 = vmatprep.mubr.f32.mxu0 0.0
      %426 = vmatmul.mubr.f32.gmra.mrb[0].mxu0 %v274
      %v427 = vpop.f32.mrb[0].mxu0
      %v428 = vadd.f32 %v359, %v427
      %v429 = vpop.f32.mrb[0].mxu0
      %430 = vmatprep.mubr.f32.mxu0 0.0
      %431 = vmatmul.mubr.f32.gmra.mrb[0].mxu0 %v275
      %v432 = vpop.f32.mrb[0].mxu0
      %v433 = vadd.f32 %v359, %v432
      %v434 = vpop.f32.mrb[0].mxu0
      %435 = vmatprep.mubr.f32.mxu0 0.0
      %436 = vmatmul.mubr.f32.gmra.mrb[0].mxu0 %v276
      %v437 = vpop.f32.mrb[0].mxu0
      %v438 = vadd.f32 %v359, %v437
      %v439 = vpop.f32.mrb[0].mxu0
      %440 = vmatprep.mubr.f32.mxu0 0.0
      %441 = vmatmul.mubr.f32.gmra.mrb[0].mxu0 %v277
      %v442 = vpop.f32.mrb[0].mxu0
      %v443 = vadd.f32 %v359, %v442
      %v444 = vpop.f32.mrb[0].mxu0
      %445 = vmatprep.mubr.f32.mxu0 0.0
      %446 = vmatmul.mubr.f32.gmra.mrb[0].mxu0 %v278
      %v447 = vpop.f32.mrb[0].mxu0
      %v448 = vadd.f32 %v359, %v447
      %v449 = vpop.f32.mrb[0].mxu0
      %450 = vmatprep.mubr.f32.mxu0 0.0
      %451 = vmatmul.mubr.f32.gmra.mrb[0].mxu0 %v279
      %v452 = vpop.f32.mrb[0].mxu0
      %v453 = vadd.f32 %v359, %v452
      %v454 = vpop.f32.mrb[0].mxu0
      %455 = vmatprep.mubr.f32.mxu0 0.0
      %456 = vmatmul.mubr.f32.gmra.mrb[0].mxu0 %v280
      %v457 = vpop.f32.mrb[0].mxu0
      %v458 = vadd.f32 %v359, %v457
      %v459 = vpop.f32.mrb[0].mxu0
      %460 = vmatprep.mubr.f32.mxu0 0.0
      %461 = vmatmul.mubr.f32.gmra.mrb[0].mxu0 %v281
      %v462 = vpop.f32.mrb[0].mxu0
      %v463 = vadd.f32 %v359, %v462
      %v464 = vpop.f32.mrb[0].mxu0
      %465 = vmatprep.mubr.f32.mxu0 0.0
      %466 = vmatmul.mubr.f32.gmra.mrb[0].mxu0 %v282
      %v467 = vpop.f32.mrb[0].mxu0
      %v468 = vadd.f32 %v359, %v467
      %v469 = vpop.f32.mrb[0].mxu0
      %470 = vmatprep.mubr.f32.mxu0 0.0
      %471 = vmatmul.mubr.f32.gmra.mrb[0].mxu0 %v283
      %v472 = vpop.f32.mrb[0].mxu0
      %v473 = vadd.f32 %v359, %v472
      %v474 = vpop.f32.mrb[0].mxu0
      %475 = vmatprep.mubr.f32.mxu0 0.0
      %476 = vmatmul.mubr.f32.gmra.mrb[0].mxu0 %v284
      %v477 = vpop.f32.mrb[0].mxu0
      %v478 = vadd.f32 %v359, %v477
      %v479 = vpop.f32.mrb[0].mxu0
      %480 = vmatprep.mubr.f32.mxu0 0.0
      %481 = vmatmul.mubr.f32.gmra.mrb[0].mxu0 %v285
      %v482 = vpop.f32.mrb[0].mxu0
      %v483 = vadd.f32 %v359, %v482
      %v484 = vpop.f32.mrb[0].mxu0
      %485 = vmatprep.mubr.f32.mxu0 0.0
      %486 = vmatmul.mubr.f32.gmra.mrb[0].mxu0 %v286
      %v487 = vpop.f32.mrb[0].mxu0
      %v488 = vadd.f32 %v359, %v487
      %v489 = vpop.f32.mrb[0].mxu0
      %490 = vmatprep.mubr.f32.mxu0 0.0
      %491 = vmatmul.mubr.f32.gmra.mrb[0].mxu0 %v287
      %v492 = vpop.f32.mrb[0].mxu0
      %v493 = vadd.f32 %v359, %v492
      %v494 = vpop.f32.mrb[0].mxu0
      %495 = vmatprep.mubr.f32.mxu0 0.0
      %496 = vmatmul.mubr.f32.gmra.mrb[0].mxu0 %v288
      %v497 = vpop.f32.mrb[0].mxu0
      %v498 = vadd.f32 %v359, %v497
      %v499 = vpop.f32.mrb[0].mxu0
      %500 = vmatprep.mubr.f32.mxu0 0.0
      %501 = vmatmul.mubr.f32.gmra.mrb[0].mxu0 %v289
      %v502 = vpop.f32.mrb[0].mxu0
      %v503 = vadd.f32 %v359, %v502
      %v504 = vpop.f32.mrb[0].mxu0
      %505 = vmatprep.mubr.f32.mxu0 0.0
      %506 = vmatmul.mubr.f32.gmra.mrb[0].mxu0 %v290
      %v507 = vpop.f32.mrb[0].mxu0
      %v508 = vadd.f32 %v359, %v507
      %v509 = vpop.f32.mrb[0].mxu0
      %510 = vmatprep.mubr.f32.mxu0 0.0
      %511 = vmatmul.mubr.f32.gmra.mrb[0].mxu0 %v291
      %v512 = vpop.f32.mrb[0].mxu0
      %v513 = vadd.f32 %v359, %v512
      %v514 = vpop.f32.mrb[0].mxu0
      %515 = vmatprep.mubr.f32.mxu0 0.0
      %516 = vmatmul.mubr.f32.gmra.mrb[0].mxu0 %v292
      %v517 = vpop.f32.mrb[0].mxu0
      %v518 = vadd.f32 %v359, %v517
      %v519 = vpop.f32.mrb[0].mxu0
      %520 = vmatprep.mubr.f32.mxu0 0.0
      %521 = vmatmul.mubr.f32.gmra.mrb[0].mxu0 %v293
      %v522 = vpop.f32.mrb[0].mxu0
      %v523 = vadd.f32 %v359, %v522
      %v524 = vpop.f32.mrb[0].mxu0
      %525 = vmatprep.mubr.f32.mxu0 0.0
      %526 = vmatmul.mubr.f32.gmra.mrb[0].mxu0 %v294
      %v527 = vpop.f32.mrb[0].mxu0
      %v528 = vadd.f32 %v359, %v527
      %v529 = vpop.f32.mrb[0].mxu0
      %530 = vmatprep.mubr.f32.mxu0 0.0
      %531 = vmatmul.mubr.f32.gmra.mrb[0].mxu0 %v295
      %v532 = vpop.f32.mrb[0].mxu0
      %v533 = vadd.f32 %v359, %v532
      %v534 = vpop.f32.mrb[0].mxu0
      %535 = vmatprep.mubr.f32.mxu0 0.0
      %536 = vmatmul.mubr.f32.gmra.mrb[0].mxu0 %v296
      %v537 = vpop.f32.mrb[0].mxu0
      %v538 = vadd.f32 %v359, %v537
      %v539 = vpop.f32.mrb[0].mxu0
      %540 = vmatprep.mubr.f32.mxu0 0.0
      %541 = vmatmul.mubr.f32.gmra.mrb[0].mxu0 %v297
      %v542 = vpop.f32.mrb[0].mxu0
      %v543 = vadd.f32 %v359, %v542
      %v544 = vpop.f32.mrb[0].mxu0
      %545 = vmatprep.mubr.f32.mxu0 0.0
      %546 = vmatmul.mubr.f32.gmra.mrb[0].mxu0 %v298
      %v547 = vpop.f32.mrb[0].mxu0
      %v548 = vadd.f32 %v359, %v547
      %v549 = vpop.f32.mrb[0].mxu0
      %550 = vmatprep.mubr.f32.mxu0 0.0
      %551 = vmatmul.mubr.f32.gmra.mrb[0].mxu0 %v299
      %v552 = vpop.f32.mrb[0].mxu0
      %v553 = vadd.f32 %v359, %v552
      %v554 = vpop.f32.mrb[0].mxu0
      %555 = vmatprep.mubr.f32.mxu0 0.0
      %556 = vmatmul.mubr.f32.gmra.mrb[0].mxu0 %v300
      %v557 = vpop.f32.mrb[0].mxu0
      %v558 = vadd.f32 %v359, %v557
      %v559 = vpop.f32.mrb[0].mxu0
      %560 = vmatprep.mubr.f32.mxu0 0.0
      %561 = vmatmul.mubr.f32.gmra.mrb[0].mxu0 %v301
      %v562 = vpop.f32.mrb[0].mxu0
      %v563 = vadd.f32 %v359, %v562
      %v564 = vpop.f32.mrb[0].mxu0
      %565 = vmatprep.mubr.f32.mxu0 0.0
      %566 = vmatmul.mubr.f32.gmra.mrb[0].mxu0 %v302
      %v567 = vpop.f32.mrb[0].mxu0
      %v568 = vadd.f32 %v359, %v567
      %v569 = vpop.f32.mrb[0].mxu0
      %570 = vmatprep.mubr.f32.mxu0 0.0
      %571 = vmatmul.mubr.f32.gmra.mrb[0].mxu0 %v303
      %v572 = vpop.f32.mrb[0].mxu0
      %v573 = vadd.f32 %v359, %v572
      %v574 = vpop.f32.mrb[0].mxu0
      %575 = vmatprep.mubr.f32.mxu0 0.0
      %576 = vmatmul.mubr.f32.gmra.mrb[0].mxu0 %v304
      %v577 = vpop.f32.mrb[0].mxu0
      %v578 = vadd.f32 %v359, %v577
      %v579 = vpop.f32.mrb[0].mxu0
      %580 = vmatprep.mubr.f32.mxu0 0.0
      %581 = vmatmul.mubr.f32.gmra.mrb[0].mxu0 %v305
      %v582 = vpop.f32.mrb[0].mxu0
      %v583 = vadd.f32 %v359, %v582
      %v584 = vpop.f32.mrb[0].mxu0
      %585 = vdwg.mxu0
      %v586 = vmax.f32 %v428, 0.0
      %v587 = vmax.f32 %v433, 0.0
      %v588 = vmax.f32 %v438, 0.0
      %v589 = vmax.f32 %v443, 0.0
      %v590 = vmax.f32 %v448, 0.0
      %v591 = vmax.f32 %v453, 0.0
      %v592 = vmax.f32 %v458, 0.0
      %v593 = vmax.f32 %v463, 0.0
      %v594 = vmax.f32 %v468, 0.0
      %v595 = vmax.f32 %v473, 0.0
      %v596 = vmax.f32 %v478, 0.0
      %v597 = vmax.f32 %v483, 0.0
      %v598 = vmax.f32 %v488, 0.0
      %v599 = vmax.f32 %v493, 0.0
      %v600 = vmax.f32 %v498, 0.0
      %v601 = vmax.f32 %v503, 0.0
      %v602 = vmax.f32 %v508, 0.0
      %v603 = vmax.f32 %v513, 0.0
      %v604 = vmax.f32 %v518, 0.0
      %v605 = vmax.f32 %v523, 0.0
      %v606 = vmax.f32 %v528, 0.0
      %v607 = vmax.f32 %v533, 0.0
      %v608 = vmax.f32 %v538, 0.0
      %v609 = vmax.f32 %v543, 0.0
      %v610 = vmax.f32 %v548, 0.0
      %v611 = vmax.f32 %v553, 0.0
      %v612 = vmax.f32 %v558, 0.0
      %v613 = vmax.f32 %v563, 0.0
      %v614 = vmax.f32 %v568, 0.0
      %v615 = vmax.f32 %v573, 0.0
      %v616 = vmax.f32 %v578, 0.0
      %v617 = vmax.f32 %v583, 0.0
      %v618 = vld [vmem:[%s4] sm:$0xff]
      %v619 = vld [vmem:[%s4 + $0x8] sm:$0xff]
      %v620 = vld [vmem:[%s4 + $0x10] sm:$0xff]
      %v621 = vld [vmem:[%s4 + $0x18] sm:$0xff]
      %v622 = vld [vmem:[%s4 + $0x20] sm:$0xff]
      %v623 = vld [vmem:[%s4 + $0x28] sm:$0xff]
      %v624 = vld [vmem:[%s4 + $0x30] sm:$0xff]
      %v625 = vld [vmem:[%s4 + $0x38] sm:$0xff]
      %v626 = vld [vmem:[%s4 + $0x40] sm:$0xff]
      %v627 = vld [vmem:[%s4 + $0x48] sm:$0xff]
      %v628 = vld [vmem:[%s4 + $0x50] sm:$0xff]
      %v629 = vld [vmem:[%s4 + $0x58] sm:$0xff]
      %v630 = vld [vmem:[%s4 + $0x60] sm:$0xff]
      %v631 = vld [vmem:[%s4 + $0x68] sm:$0xff]
      %v632 = vld [vmem:[%s4 + $0x70] sm:$0xff]
      %v633 = vld [vmem:[%s4 + $0x78] sm:$0xff]
      %v634 = vld [vmem:[%s5] sm:$0x1]
      %v636 = vlaneseq
      %v637 = vshrl.u32 %v636, 7
      %v638 = vsub.s32 0, %v637
      %v639 = vrot.slane %v634, %v638
      %641 = vmatprep.subr.mxu0 0.0
      %642 = vmatpush1.msra.mxu0 %v618
      %643 = vmatprep.subr.mxu0 0.0
      %644 = vmatpush1.msra.mxu0 %v619
      %645 = vmatprep.subr.mxu0 0.0
      %646 = vmatpush1.msra.mxu0 %v620
      %647 = vmatprep.subr.mxu0 0.0
      %648 = vmatpush1.msra.mxu0 %v621
      %649 = vmatprep.subr.mxu0 0.0
      %650 = vmatpush1.msra.mxu0 %v622
      %651 = vmatprep.subr.mxu0 0.0
      %652 = vmatpush1.msra.mxu0 %v623
      %653 = vmatprep.subr.mxu0 0.0
      %654 = vmatpush1.msra.mxu0 %v624
      %655 = vmatprep.subr.mxu0 0.0
      %656 = vmatpush1.msra.mxu0 %v625
      %657 = vmatprep.subr.mxu0 0.0
      %658 = vmatpush1.msra.mxu0 %v626
      %659 = vmatprep.subr.mxu0 0.0
      %660 = vmatpush1.msra.mxu0 %v627
      %661 = vmatprep.subr.mxu0 0.0
      %662 = vmatpush1.msra.mxu0 %v628
      %663 = vmatprep.subr.mxu0 0.0
      %664 = vmatpush1.msra.mxu0 %v629
      %665 = vmatprep.subr.mxu0 0.0
      %666 = vmatpush1.msra.mxu0 %v630
      %667 = vmatprep.subr.mxu0 0.0
      %668 = vmatpush1.msra.mxu0 %v631
      %669 = vmatprep.subr.mxu0 0.0
      %670 = vmatpush1.msra.mxu0 %v632
      %671 = vmatprep.subr.mxu0 0.0
      %672 = vmatpush1.msra.mxu0 %v633
      %673 = vmatprep.subr.mxu0 0.0
      %674 = vmatpush1.msra.mxu0 0.0
      %675 = vmatprep.subr.mxu0 0.0
      %676 = vmatpush1.msra.mxu0 0.0
      %677 = vmatprep.subr.mxu0 0.0
      %678 = vmatpush1.msra.mxu0 0.0
      %679 = vmatprep.subr.mxu0 0.0
      %680 = vmatpush1.msra.mxu0 0.0
      %681 = vmatprep.subr.mxu0 0.0
      %682 = vmatpush1.msra.mxu0 0.0
      %683 = vmatprep.subr.mxu0 0.0
      %684 = vmatpush1.msra.mxu0 0.0
      %685 = vmatprep.subr.mxu0 0.0
      %686 = vmatpush1.msra.mxu0 0.0
      %687 = vmatprep.subr.mxu0 0.0
      %688 = vmatpush1.msra.mxu0 0.0
      %689 = vmatprep.subr.mxu0 0.0
      %690 = vmatpush1.msra.mxu0 0.0
      %691 = vmatprep.subr.mxu0 0.0
      %692 = vmatpush1.msra.mxu0 0.0
      %693 = vmatprep.subr.mxu0 0.0
      %694 = vmatpush1.msra.mxu0 0.0
      %695 = vmatprep.subr.mxu0 0.0
      %696 = vmatpush1.msra.mxu0 0.0
      %697 = vmatprep.subr.mxu0 0.0
      %698 = vmatpush1.msra.mxu0 0.0
      %699 = vmatprep.subr.mxu0 0.0
      %700 = vmatpush1.msra.mxu0 0.0
      %701 = vmatprep.subr.mxu0 0.0
      %702 = vmatpush1.msra.mxu0 0.0
      %703 = vmatprep.subr.mxu0 0.0
      %704 = vmatpush1.msra.mxu0 0.0
      %705 = vmatprep.mubr.f32.mxu0 0.0
      %706 = vmatmul.mubr.f32.gmra.mrb[0].mxu0 %v586
      %v707 = vpop.f32.mrb[0].mxu0
      %v708 = vadd.f32 %v639, %v707
      %v709 = vpop.f32.mrb[0].mxu0
      %710 = vmatprep.mubr.f32.mxu0 0.0
      %711 = vmatmul.mubr.f32.gmra.mrb[0].mxu0 %v587
      %v712 = vpop.f32.mrb[0].mxu0
      %v713 = vadd.f32 %v639, %v712
      %v714 = vpop.f32.mrb[0].mxu0
      %715 = vmatprep.mubr.f32.mxu0 0.0
      %716 = vmatmul.mubr.f32.gmra.mrb[0].mxu0 %v588
      %v717 = vpop.f32.mrb[0].mxu0
      %v718 = vadd.f32 %v639, %v717
      %v719 = vpop.f32.mrb[0].mxu0
      %720 = vmatprep.mubr.f32.mxu0 0.0
      %721 = vmatmul.mubr.f32.gmra.mrb[0].mxu0 %v589
      %v722 = vpop.f32.mrb[0].mxu0
      %v723 = vadd.f32 %v639, %v722
      %v724 = vpop.f32.mrb[0].mxu0
      %725 = vmatprep.mubr.f32.mxu0 0.0
      %726 = vmatmul.mubr.f32.gmra.mrb[0].mxu0 %v590
      %v727 = vpop.f32.mrb[0].mxu0
      %v728 = vadd.f32 %v639, %v727
      %v729 = vpop.f32.mrb[0].mxu0
      %730 = vmatprep.mubr.f32.mxu0 0.0
      %731 = vmatmul.mubr.f32.gmra.mrb[0].mxu0 %v591
      %v732 = vpop.f32.mrb[0].mxu0
      %v733 = vadd.f32 %v639, %v732
      %v734 = vpop.f32.mrb[0].mxu0
      %735 = vmatprep.mubr.f32.mxu0 0.0
      %736 = vmatmul.mubr.f32.gmra.mrb[0].mxu0 %v592
      %v737 = vpop.f32.mrb[0].mxu0
      %v738 = vadd.f32 %v639, %v737
      %v739 = vpop.f32.mrb[0].mxu0
      %740 = vmatprep.mubr.f32.mxu0 0.0
      %741 = vmatmul.mubr.f32.gmra.mrb[0].mxu0 %v593
      %v742 = vpop.f32.mrb[0].mxu0
      %v743 = vadd.f32 %v639, %v742
      %v744 = vpop.f32.mrb[0].mxu0
      %745 = vmatprep.mubr.f32.mxu0 0.0
      %746 = vmatmul.mubr.f32.gmra.mrb[0].mxu0 %v594
      %v747 = vpop.f32.mrb[0].mxu0
      %v748 = vadd.f32 %v639, %v747
      %v749 = vpop.f32.mrb[0].mxu0
      %750 = vmatprep.mubr.f32.mxu0 0.0
      %751 = vmatmul.mubr.f32.gmra.mrb[0].mxu0 %v595
      %v752 = vpop.f32.mrb[0].mxu0
      %v753 = vadd.f32 %v639, %v752
      %v754 = vpop.f32.mrb[0].mxu0
      %755 = vmatprep.mubr.f32.mxu0 0.0
      %756 = vmatmul.mubr.f32.gmra.mrb[0].mxu0 %v596
      %v757 = vpop.f32.mrb[0].mxu0
      %v758 = vadd.f32 %v639, %v757
      %v759 = vpop.f32.mrb[0].mxu0
      %760 = vmatprep.mubr.f32.mxu0 0.0
      %761 = vmatmul.mubr.f32.gmra.mrb[0].mxu0 %v597
      %v762 = vpop.f32.mrb[0].mxu0
      %v763 = vadd.f32 %v639, %v762
      %v764 = vpop.f32.mrb[0].mxu0
      %765 = vmatprep.mubr.f32.mxu0 0.0
      %766 = vmatmul.mubr.f32.gmra.mrb[0].mxu0 %v598
      %v767 = vpop.f32.mrb[0].mxu0
      %v768 = vadd.f32 %v639, %v767
      %v769 = vpop.f32.mrb[0].mxu0
      %770 = vmatprep.mubr.f32.mxu0 0.0
      %771 = vmatmul.mubr.f32.gmra.mrb[0].mxu0 %v599
      %v772 = vpop.f32.mrb[0].mxu0
      %v773 = vadd.f32 %v639, %v772
      %v774 = vpop.f32.mrb[0].mxu0
      %775 = vmatprep.mubr.f32.mxu0 0.0
      %776 = vmatmul.mubr.f32.gmra.mrb[0].mxu0 %v600
      %v777 = vpop.f32.mrb[0].mxu0
      %v778 = vadd.f32 %v639, %v777
      %v779 = vpop.f32.mrb[0].mxu0
      %780 = vmatprep.mubr.f32.mxu0 0.0
      %781 = vmatmul.mubr.f32.gmra.mrb[0].mxu0 %v601
      %v782 = vpop.f32.mrb[0].mxu0
      %v783 = vadd.f32 %v639, %v782
      %v784 = vpop.f32.mrb[0].mxu0
      %785 = vmatprep.mubr.f32.mxu0 0.0
      %786 = vmatmul.mubr.f32.gmra.mrb[0].mxu0 %v602
      %v787 = vpop.f32.mrb[0].mxu0
      %v788 = vadd.f32 %v639, %v787
      %v789 = vpop.f32.mrb[0].mxu0
      %790 = vmatprep.mubr.f32.mxu0 0.0
      %791 = vmatmul.mubr.f32.gmra.mrb[0].mxu0 %v603
      %v792 = vpop.f32.mrb[0].mxu0
      %v793 = vadd.f32 %v639, %v792
      %v794 = vpop.f32.mrb[0].mxu0
      %795 = vmatprep.mubr.f32.mxu0 0.0
      %796 = vmatmul.mubr.f32.gmra.mrb[0].mxu0 %v604
      %v797 = vpop.f32.mrb[0].mxu0
      %v798 = vadd.f32 %v639, %v797
      %v799 = vpop.f32.mrb[0].mxu0
      %800 = vmatprep.mubr.f32.mxu0 0.0
      %801 = vmatmul.mubr.f32.gmra.mrb[0].mxu0 %v605
      %v802 = vpop.f32.mrb[0].mxu0
      %v803 = vadd.f32 %v639, %v802
      %v804 = vpop.f32.mrb[0].mxu0
      %805 = vmatprep.mubr.f32.mxu0 0.0
      %806 = vmatmul.mubr.f32.gmra.mrb[0].mxu0 %v606
      %v807 = vpop.f32.mrb[0].mxu0
      %v808 = vadd.f32 %v639, %v807
      %v809 = vpop.f32.mrb[0].mxu0
      %810 = vmatprep.mubr.f32.mxu0 0.0
      %811 = vmatmul.mubr.f32.gmra.mrb[0].mxu0 %v607
      %v812 = vpop.f32.mrb[0].mxu0
      %v813 = vadd.f32 %v639, %v812
      %v814 = vpop.f32.mrb[0].mxu0
      %815 = vmatprep.mubr.f32.mxu0 0.0
      %816 = vmatmul.mubr.f32.gmra.mrb[0].mxu0 %v608
      %v817 = vpop.f32.mrb[0].mxu0
      %v818 = vadd.f32 %v639, %v817
      %v819 = vpop.f32.mrb[0].mxu0
      %820 = vmatprep.mubr.f32.mxu0 0.0
      %821 = vmatmul.mubr.f32.gmra.mrb[0].mxu0 %v609
      %v822 = vpop.f32.mrb[0].mxu0
      %v823 = vadd.f32 %v639, %v822
      %v824 = vpop.f32.mrb[0].mxu0
      %825 = vmatprep.mubr.f32.mxu0 0.0
      %826 = vmatmul.mubr.f32.gmra.mrb[0].mxu0 %v610
      %v827 = vpop.f32.mrb[0].mxu0
      %v828 = vadd.f32 %v639, %v827
      %v829 = vpop.f32.mrb[0].mxu0
      %830 = vmatprep.mubr.f32.mxu0 0.0
      %831 = vmatmul.mubr.f32.gmra.mrb[0].mxu0 %v611
      %v832 = vpop.f32.mrb[0].mxu0
      %v833 = vadd.f32 %v639, %v832
      %v834 = vpop.f32.mrb[0].mxu0
      %835 = vmatprep.mubr.f32.mxu0 0.0
      %836 = vmatmul.mubr.f32.gmra.mrb[0].mxu0 %v612
      %v837 = vpop.f32.mrb[0].mxu0
      %v838 = vadd.f32 %v639, %v837
      %v839 = vpop.f32.mrb[0].mxu0
      %840 = vmatprep.mubr.f32.mxu0 0.0
      %841 = vmatmul.mubr.f32.gmra.mrb[0].mxu0 %v613
      %v842 = vpop.f32.mrb[0].mxu0
      %v843 = vadd.f32 %v639, %v842
      %v844 = vpop.f32.mrb[0].mxu0
      %845 = vmatprep.mubr.f32.mxu0 0.0
      %846 = vmatmul.mubr.f32.gmra.mrb[0].mxu0 %v614
      %v847 = vpop.f32.mrb[0].mxu0
      %v848 = vadd.f32 %v639, %v847
      %v849 = vpop.f32.mrb[0].mxu0
      %850 = vmatprep.mubr.f32.mxu0 0.0
      %851 = vmatmul.mubr.f32.gmra.mrb[0].mxu0 %v615
      %v852 = vpop.f32.mrb[0].mxu0
      %v853 = vadd.f32 %v639, %v852
      %v854 = vpop.f32.mrb[0].mxu0
      %855 = vmatprep.mubr.f32.mxu0 0.0
      %856 = vmatmul.mubr.f32.gmra.mrb[0].mxu0 %v616
      %v857 = vpop.f32.mrb[0].mxu0
      %v858 = vadd.f32 %v639, %v857
      %v859 = vpop.f32.mrb[0].mxu0
      %860 = vmatprep.mubr.f32.mxu0 0.0
      %861 = vmatmul.mubr.f32.gmra.mrb[0].mxu0 %v617
      %v862 = vpop.f32.mrb[0].mxu0
      %v863 = vadd.f32 %v639, %v862
      %v864 = vpop.f32.mrb[0].mxu0
      %865 = vdwg.mxu0
      %v866 = vlaneseq
      %v867 = vshrl.u32 %v866, 7
      %v868 = vadd.s32 %v867, 8
      %v869 = vadd.s32 %v867, 16
      %v870 = vadd.s32 %v867, 24
      %v871 = vadd.s32 %v867, 32
      %v872 = vadd.s32 %v867, 40
      %v873 = vadd.s32 %v867, 48
      %v874 = vadd.s32 %v867, 56
      %v875 = vadd.s32 %v867, 64
      %v876 = vadd.s32 %v867, 72
      %v877 = vadd.s32 %v867, 80
      %v878 = vadd.s32 %v867, 88
      %v879 = vadd.s32 %v867, 96
      %v880 = vadd.s32 %v867, 104
      %v881 = vadd.s32 %v867, 112
      %v882 = vadd.s32 %v867, 120
      %v883 = vadd.s32 %v867, 128
      %v884 = vadd.s32 %v867, 136
      %v885 = vadd.s32 %v867, 144
      %v886 = vadd.s32 %v867, 152
      %v887 = vadd.s32 %v867, 160
      %v888 = vadd.s32 %v867, 168
      %v889 = vadd.s32 %v867, 176
      %v890 = vadd.s32 %v867, 184
      %v891 = vadd.s32 %v867, 192
      %v892 = vadd.s32 %v867, 200
      %v893 = vadd.s32 %v867, 208
      %v894 = vadd.s32 %v867, 216
      %v895 = vadd.s32 %v867, 224
      %v896 = vadd.s32 %v867, 232
      %v897 = vadd.s32 %v867, 240
      %v898 = vadd.s32 %v867, 248
      %s899 = smul.u32 %s17, 256
      %v900 = vstv %s899
      %v901 = vadd.s32 %v867, %v900
      %v902 = vadd.s32 %v868, %v900
      %v903 = vadd.s32 %v869, %v900
      %v904 = vadd.s32 %v870, %v900
      %v905 = vadd.s32 %v871, %v900
      %v906 = vadd.s32 %v872, %v900
      %v907 = vadd.s32 %v873, %v900
      %v908 = vadd.s32 %v874, %v900
      %v909 = vadd.s32 %v875, %v900
      %v910 = vadd.s32 %v876, %v900
      %v911 = vadd.s32 %v877, %v900
      %v912 = vadd.s32 %v878, %v900
      %v913 = vadd.s32 %v879, %v900
      %v914 = vadd.s32 %v880, %v900
      %v915 = vadd.s32 %v881, %v900
      %v916 = vadd.s32 %v882, %v900
      %v917 = vadd.s32 %v883, %v900
      %v918 = vadd.s32 %v884, %v900
      %v919 = vadd.s32 %v885, %v900
      %v920 = vadd.s32 %v886, %v900
      %v921 = vadd.s32 %v887, %v900
      %v922 = vadd.s32 %v888, %v900
      %v923 = vadd.s32 %v889, %v900
      %v924 = vadd.s32 %v890, %v900
      %v925 = vadd.s32 %v891, %v900
      %v926 = vadd.s32 %v892, %v900
      %v927 = vadd.s32 %v893, %v900
      %v928 = vadd.s32 %v894, %v900
      %v929 = vadd.s32 %v895, %v900
      %v930 = vadd.s32 %v896, %v900
      %v931 = vadd.s32 %v897, %v900
      %v932 = vadd.s32 %v898, %v900
      %vm933 = vcmp.lt.s32.totalorder %v901, 500
      %vm934 = vcmp.lt.s32.totalorder %v902, 500
      %vm935 = vcmp.lt.s32.totalorder %v903, 500
      %vm936 = vcmp.lt.s32.totalorder %v904, 500
      %vm937 = vcmp.lt.s32.totalorder %v905, 500
      %vm938 = vcmp.lt.s32.totalorder %v906, 500
      %vm939 = vcmp.lt.s32.totalorder %v907, 500
      %vm940 = vcmp.lt.s32.totalorder %v908, 500
      %vm941 = vcmp.lt.s32.totalorder %v909, 500
      %vm942 = vcmp.lt.s32.totalorder %v910, 500
      %vm943 = vcmp.lt.s32.totalorder %v911, 500
      %vm944 = vcmp.lt.s32.totalorder %v912, 500
      %vm945 = vcmp.lt.s32.totalorder %v913, 500
      %vm946 = vcmp.lt.s32.totalorder %v914, 500
      %vm947 = vcmp.lt.s32.totalorder %v915, 500
      %vm948 = vcmp.lt.s32.totalorder %v916, 500
      %vm949 = vcmp.lt.s32.totalorder %v917, 500
      %vm950 = vcmp.lt.s32.totalorder %v918, 500
      %vm951 = vcmp.lt.s32.totalorder %v919, 500
      %vm952 = vcmp.lt.s32.totalorder %v920, 500
      %vm953 = vcmp.lt.s32.totalorder %v921, 500
      %vm954 = vcmp.lt.s32.totalorder %v922, 500
      %vm955 = vcmp.lt.s32.totalorder %v923, 500
      %vm956 = vcmp.lt.s32.totalorder %v924, 500
      %vm957 = vcmp.lt.s32.totalorder %v925, 500
      %vm958 = vcmp.lt.s32.totalorder %v926, 500
      %vm959 = vcmp.lt.s32.totalorder %v927, 500
      %vm960 = vcmp.lt.s32.totalorder %v928, 500
      %vm961 = vcmp.lt.s32.totalorder %v929, 500
      %vm962 = vcmp.lt.s32.totalorder %v930, 500
      %vm963 = vcmp.lt.s32.totalorder %v931, 500
      %vm964 = vcmp.lt.s32.totalorder %v932, 500
      %v965 = vsel %vm933, 1, 0
      %v966 = vsel %vm934, 1, 0
      %v967 = vsel %vm935, 1, 0
      %v968 = vsel %vm936, 1, 0
      %v969 = vsel %vm937, 1, 0
      %v970 = vsel %vm938, 1, 0
      %v971 = vsel %vm939, 1, 0
      %v972 = vsel %vm940, 1, 0
      %v973 = vsel %vm941, 1, 0
      %v974 = vsel %vm942, 1, 0
      %v975 = vsel %vm943, 1, 0
      %v976 = vsel %vm944, 1, 0
      %v977 = vsel %vm945, 1, 0
      %v978 = vsel %vm946, 1, 0
      %v979 = vsel %vm947, 1, 0
      %v980 = vsel %vm948, 1, 0
      %v981 = vsel %vm949, 1, 0
      %v982 = vsel %vm950, 1, 0
      %v983 = vsel %vm951, 1, 0
      %v984 = vsel %vm952, 1, 0
      %v985 = vsel %vm953, 1, 0
      %v986 = vsel %vm954, 1, 0
      %v987 = vsel %vm955, 1, 0
      %v988 = vsel %vm956, 1, 0
      %v989 = vsel %vm957, 1, 0
      %v990 = vsel %vm958, 1, 0
      %v991 = vsel %vm959, 1, 0
      %v992 = vsel %vm960, 1, 0
      %v993 = vsel %vm961, 1, 0
      %v994 = vsel %vm962, 1, 0
      %v995 = vsel %vm963, 1, 0
      %v996 = vsel %vm964, 1, 0
      %vm997 = vcmp.eq.s32.totalorder %v965, 1
      %vm998 = vcmp.eq.s32.totalorder %v966, 1
      %vm999 = vcmp.eq.s32.totalorder %v967, 1
      %vm1000 = vcmp.eq.s32.totalorder %v968, 1
      %vm1001 = vcmp.eq.s32.totalorder %v969, 1
      %vm1002 = vcmp.eq.s32.totalorder %v970, 1
      %vm1003 = vcmp.eq.s32.totalorder %v971, 1
      %vm1004 = vcmp.eq.s32.totalorder %v972, 1
      %vm1005 = vcmp.eq.s32.totalorder %v973, 1
      %vm1006 = vcmp.eq.s32.totalorder %v974, 1
      %vm1007 = vcmp.eq.s32.totalorder %v975, 1
      %vm1008 = vcmp.eq.s32.totalorder %v976, 1
      %vm1009 = vcmp.eq.s32.totalorder %v977, 1
      %vm1010 = vcmp.eq.s32.totalorder %v978, 1
      %vm1011 = vcmp.eq.s32.totalorder %v979, 1
      %vm1012 = vcmp.eq.s32.totalorder %v980, 1
      %vm1013 = vcmp.eq.s32.totalorder %v981, 1
      %vm1014 = vcmp.eq.s32.totalorder %v982, 1
      %vm1015 = vcmp.eq.s32.totalorder %v983, 1
      %vm1016 = vcmp.eq.s32.totalorder %v984, 1
      %vm1017 = vcmp.eq.s32.totalorder %v985, 1
      %vm1018 = vcmp.eq.s32.totalorder %v986, 1
      %vm1019 = vcmp.eq.s32.totalorder %v987, 1
      %vm1020 = vcmp.eq.s32.totalorder %v988, 1
      %vm1021 = vcmp.eq.s32.totalorder %v989, 1
      %vm1022 = vcmp.eq.s32.totalorder %v990, 1
      %vm1023 = vcmp.eq.s32.totalorder %v991, 1
      %vm1024 = vcmp.eq.s32.totalorder %v992, 1
      %vm1025 = vcmp.eq.s32.totalorder %v993, 1
      %vm1026 = vcmp.eq.s32.totalorder %v994, 1
      %vm1027 = vcmp.eq.s32.totalorder %v995, 1
      %vm1028 = vcmp.eq.s32.totalorder %v996, 1
      %v1029 = vsel %vm997, %v708, 0.0
      %v1030 = vsel %vm998, %v713, 0.0
      %v1031 = vsel %vm999, %v718, 0.0
      %v1032 = vsel %vm1000, %v723, 0.0
      %v1033 = vsel %vm1001, %v728, 0.0
      %v1034 = vsel %vm1002, %v733, 0.0
      %v1035 = vsel %vm1003, %v738, 0.0
      %v1036 = vsel %vm1004, %v743, 0.0
      %v1037 = vsel %vm1005, %v748, 0.0
      %v1038 = vsel %vm1006, %v753, 0.0
      %v1039 = vsel %vm1007, %v758, 0.0
      %v1040 = vsel %vm1008, %v763, 0.0
      %v1041 = vsel %vm1009, %v768, 0.0
      %v1042 = vsel %vm1010, %v773, 0.0
      %v1043 = vsel %vm1011, %v778, 0.0
      %v1044 = vsel %vm1012, %v783, 0.0
      %v1045 = vsel %vm1013, %v788, 0.0
      %v1046 = vsel %vm1014, %v793, 0.0
      %v1047 = vsel %vm1015, %v798, 0.0
      %v1048 = vsel %vm1016, %v803, 0.0
      %v1049 = vsel %vm1017, %v808, 0.0
      %v1050 = vsel %vm1018, %v813, 0.0
      %v1051 = vsel %vm1019, %v818, 0.0
      %v1052 = vsel %vm1020, %v823, 0.0
      %v1053 = vsel %vm1021, %v828, 0.0
      %v1054 = vsel %vm1022, %v833, 0.0
      %v1055 = vsel %vm1023, %v838, 0.0
      %v1056 = vsel %vm1024, %v843, 0.0
      %v1057 = vsel %vm1025, %v848, 0.0
      %v1058 = vsel %vm1026, %v853, 0.0
      %v1059 = vsel %vm1027, %v858, 0.0
      %v1060 = vsel %vm1028, %v863, 0.0
      %v1061 = vmul.f32 %v1029, %v306
      %v1062 = vmul.f32 %v1030, %v307
      %v1063 = vmul.f32 %v1031, %v308
      %v1064 = vmul.f32 %v1032, %v309
      %v1065 = vmul.f32 %v1033, %v310
      %v1066 = vmul.f32 %v1034, %v311
      %v1067 = vmul.f32 %v1035, %v312
      %v1068 = vmul.f32 %v1036, %v313
      %v1069 = vmul.f32 %v1037, %v314
      %v1070 = vmul.f32 %v1038, %v315
      %v1071 = vmul.f32 %v1039, %v316
      %v1072 = vmul.f32 %v1040, %v317
      %v1073 = vmul.f32 %v1041, %v318
      %v1074 = vmul.f32 %v1042, %v319
      %v1075 = vmul.f32 %v1043, %v320
      %v1076 = vmul.f32 %v1044, %v321
      %v1077 = vmul.f32 %v1045, %v322
      %v1078 = vmul.f32 %v1046, %v323
      %v1079 = vmul.f32 %v1047, %v324
      %v1080 = vmul.f32 %v1048, %v325
      %v1081 = vmul.f32 %v1049, %v326
      %v1082 = vmul.f32 %v1050, %v327
      %v1083 = vmul.f32 %v1051, %v328
      %v1084 = vmul.f32 %v1052, %v329
      %v1085 = vmul.f32 %v1053, %v330
      %v1086 = vmul.f32 %v1054, %v331
      %v1087 = vmul.f32 %v1055, %v332
      %v1088 = vmul.f32 %v1056, %v333
      %v1089 = vmul.f32 %v1057, %v334
      %v1090 = vmul.f32 %v1058, %v335
      %v1091 = vmul.f32 %v1059, %v336
      %v1092 = vmul.f32 %v1060, %v337
      %v1093 = vadd.f32 %v1061, %v1062
      %v1094 = vadd.f32 %v1093, %v1063
      %v1095 = vadd.f32 %v1094, %v1064
      %v1096 = vadd.f32 %v1095, %v1065
      %v1097 = vadd.f32 %v1096, %v1066
      %v1098 = vadd.f32 %v1097, %v1067
      %v1099 = vadd.f32 %v1098, %v1068
      %v1100 = vadd.f32 %v1099, %v1069
      %v1101 = vadd.f32 %v1100, %v1070
      %v1102 = vadd.f32 %v1101, %v1071
      %v1103 = vadd.f32 %v1102, %v1072
      %v1104 = vadd.f32 %v1103, %v1073
      %v1105 = vadd.f32 %v1104, %v1074
      %v1106 = vadd.f32 %v1105, %v1075
      %v1107 = vadd.f32 %v1106, %v1076
      %v1108 = vadd.f32 %v1107, %v1077
      %v1109 = vadd.f32 %v1108, %v1078
      %v1110 = vadd.f32 %v1109, %v1079
      %v1111 = vadd.f32 %v1110, %v1080
      %v1112 = vadd.f32 %v1111, %v1081
      %v1113 = vadd.f32 %v1112, %v1082
      %v1114 = vadd.f32 %v1113, %v1083
      %v1115 = vadd.f32 %v1114, %v1084
      %v1116 = vadd.f32 %v1115, %v1085
      %v1117 = vadd.f32 %v1116, %v1086
      %v1118 = vadd.f32 %v1117, %v1087
      %v1119 = vadd.f32 %v1118, %v1088
      %v1120 = vadd.f32 %v1119, %v1089
      %v1121 = vadd.f32 %v1120, %v1090
      %v1122 = vadd.f32 %v1121, %v1091
      %v1123 = vadd.f32 %v1122, %v1092
      %v1124 = vrot.slane %v1123, 4
      %v1125 = vadd.f32 %v1123, %v1124
      %v1126 = vrot.slane %v1125, 2
      %v1127 = vadd.f32 %v1125, %v1126
      %v1128 = vrot.slane %v1127, 1
      %v1129 = vadd.f32 %v1127, %v1128
      %v1130 = vadd.f32 %v306, %v307
      %v1131 = vadd.f32 %v1130, %v308
      %v1132 = vadd.f32 %v1131, %v309
      %v1133 = vadd.f32 %v1132, %v310
      %v1134 = vadd.f32 %v1133, %v311
      %v1135 = vadd.f32 %v1134, %v312
      %v1136 = vadd.f32 %v1135, %v313
      %v1137 = vadd.f32 %v1136, %v314
      %v1138 = vadd.f32 %v1137, %v315
      %v1139 = vadd.f32 %v1138, %v316
      %v1140 = vadd.f32 %v1139, %v317
      %v1141 = vadd.f32 %v1140, %v318
      %v1142 = vadd.f32 %v1141, %v319
      %v1143 = vadd.f32 %v1142, %v320
      %v1144 = vadd.f32 %v1143, %v321
      %v1145 = vadd.f32 %v1144, %v322
      %v1146 = vadd.f32 %v1145, %v323
      %v1147 = vadd.f32 %v1146, %v324
      %v1148 = vadd.f32 %v1147, %v325
      %v1149 = vadd.f32 %v1148, %v326
      %v1150 = vadd.f32 %v1149, %v327
      %v1151 = vadd.f32 %v1150, %v328
      %v1152 = vadd.f32 %v1151, %v329
      %v1153 = vadd.f32 %v1152, %v330
      %v1154 = vadd.f32 %v1153, %v331
      %v1155 = vadd.f32 %v1154, %v332
      %v1156 = vadd.f32 %v1155, %v333
      %v1157 = vadd.f32 %v1156, %v334
      %v1158 = vadd.f32 %v1157, %v335
      %v1159 = vadd.f32 %v1158, %v336
      %v1160 = vadd.f32 %v1159, %v337
      %v1161 = vrot.slane %v1160, 4
      %v1162 = vadd.f32 %v1160, %v1161
      %v1163 = vrot.slane %v1162, 2
      %v1164 = vadd.f32 %v1162, %v1163
      %v1165 = vrot.slane %v1164, 1
      %v1166 = vadd.f32 %v1164, %v1165
      %v1167 = vadd.f32 %v1029, %v1030
      %v1168 = vadd.f32 %v1167, %v1031
      %v1169 = vadd.f32 %v1168, %v1032
      %v1170 = vadd.f32 %v1169, %v1033
      %v1171 = vadd.f32 %v1170, %v1034
      %v1172 = vadd.f32 %v1171, %v1035
      %v1173 = vadd.f32 %v1172, %v1036
      %v1174 = vadd.f32 %v1173, %v1037
      %v1175 = vadd.f32 %v1174, %v1038
      %v1176 = vadd.f32 %v1175, %v1039
      %v1177 = vadd.f32 %v1176, %v1040
      %v1178 = vadd.f32 %v1177, %v1041
      %v1179 = vadd.f32 %v1178, %v1042
      %v1180 = vadd.f32 %v1179, %v1043
      %v1181 = vadd.f32 %v1180, %v1044
      %v1182 = vadd.f32 %v1181, %v1045
      %v1183 = vadd.f32 %v1182, %v1046
      %v1184 = vadd.f32 %v1183, %v1047
      %v1185 = vadd.f32 %v1184, %v1048
      %v1186 = vadd.f32 %v1185, %v1049
      %v1187 = vadd.f32 %v1186, %v1050
      %v1188 = vadd.f32 %v1187, %v1051
      %v1189 = vadd.f32 %v1188, %v1052
      %v1190 = vadd.f32 %v1189, %v1053
      %v1191 = vadd.f32 %v1190, %v1054
      %v1192 = vadd.f32 %v1191, %v1055
      %v1193 = vadd.f32 %v1192, %v1056
      %v1194 = vadd.f32 %v1193, %v1057
      %v1195 = vadd.f32 %v1194, %v1058
      %v1196 = vadd.f32 %v1195, %v1059
      %v1197 = vadd.f32 %v1196, %v1060
      %v1198 = vrot.slane %v1197, 4
      %v1199 = vadd.f32 %v1197, %v1198
      %v1200 = vrot.slane %v1199, 2
      %v1201 = vadd.f32 %v1199, %v1200
      %v1202 = vrot.slane %v1201, 1
      %v1203 = vadd.f32 %v1201, %v1202
      %1204 = vst [vmem:[%s273] sm:$0xff] 0.0
      %1205 = vst [vmem:[%s273] sm:$0x1] %v1129
      %1206 = vst [vmem:[%s273 + $0x1] sm:$0x1] %v1166
      %1207 = vst [vmem:[%s273 + $0x2] sm:$0x1] %v1203
      %p1208 = scmp.lt.s32.totalorder %s17, 1
      %s1209 = scalar_select %p1208, %s17, 1
      %s1210 = smul.addr %s1209, 8
      %s1211 = scalar_lea.vmem %s6, %s1210
      // Predicated region
      $region45: #{club_mean_forward.1} parent=43 // pred_check
        %p1212 = pneg %p171
      $region46: #{club_mean_forward.1} parent=43 // pred_check_branch
        %1214 = sbr.rel (%p1212) target = $region48
      $region47: #{club_mean_forward.1} parent=43 // pred_region
        _
      $region48: #{club_mean_forward.1} parent=43 // pred_fallthru
        _
    $region44: #{club_mean_forward.1} parent=5 // pred_fallthru
      _
    %p1215 = scmp.le.s32.totalorder 2, %s12
    // Predicated region
    $region49: #{club_mean_forward.1} parent=5 // pred_check
      %p1216 = pneg %p1215
    $region50: #{club_mean_forward.1} parent=5 // pred_check_branch
      %1218 = sbr.rel (%p1216) target = $region52
    $region51: #{club_mean_forward.1} parent=5 // pred_region
      %s1219 = ssub.s32 %s12, 2
      // Predicated region
      $region53: #{club_mean_forward.1} parent=51 // pred_check
        %p1220 = pneg %p177
      $region54: #{club_mean_forward.1} parent=51 // pred_check_branch
        %1222 = sbr.rel (%p1220) target = $region56
      $region55: #{club_mean_forward.1} parent=51 // pred_region
        %p1223 = scmp.lt.s32.totalorder %s18, 1
        %s1224 = scalar_select %p1223, %s18, 1
        %s1225 = smul.addr %s1224, 8
        %s1226 = scalar_lea.vmem %s6, %s1225
      $region56: #{club_mean_forward.1} parent=51 // pred_fallthru
        _
    $region52: #{club_mean_forward.1} parent=5 // pred_fallthru
      _
  $region6: #{club_mean_forward.1} parent=0 // loop_footer
    %s16 = sadd.s32 1, %s12
  $region7: #{club_mean_forward.1} parent=0 // loop_footer_branch
    %11 = sbr.rel target = $region3
  $region8: #{club_mean_forward.1} parent=0 // loop_exit
    _

</llo_original>
